<compile_context>
chip_gen: v7x
topology: tpu7x:2x2x1
jax: 0.10.0
libtpu: 0.0.40
codegen_flags: <defaults>
</compile_context>

<pallas_src>
import math

import jax
import jax.numpy as jnp
from jax import lax
from jax.experimental import pallas as pl
from jax.experimental.pallas import tpu as pltpu


def _round_up(x, m):
    return ((x + m - 1) // m) * m


# ----------------------------------------------------------------------------
# Plain-JAX glue: sampling / grouping (data-dependent gathers)
# ----------------------------------------------------------------------------
def furthest_point_sample(xyz_bn3, npoint):
    """xyz_bn3: (B, N, 3) -> idx (B, npoint) int32 (deterministic, start at 0)."""
    B, N, _ = xyz_bn3.shape

    def body(i, state):
        idx, dists, farthest = state
        idx = idx.at[:, i].set(farthest)
        centroid = jnp.take_along_axis(xyz_bn3, farthest[:, None, None], axis=1)  # (B,1,3)
        d = jnp.sum((xyz_bn3 - centroid) ** 2, axis=-1)                            # (B,N)
        dists = jnp.minimum(dists, d)
        farthest = jnp.argmax(dists, axis=-1).astype(jnp.int32)
        return idx, dists, farthest

    idx0 = jnp.zeros((B, npoint), jnp.int32)
    dist0 = jnp.full((B, N), 1e10, jnp.float32)
    far0 = jnp.zeros((B,), jnp.int32)
    idx, _, _ = lax.fori_loop(0, npoint, body, (idx0, dist0, far0))
    return idx


def ball_query(radius, nsample, xyz_bn3, new_xyz_bs3):
    """xyz (B,N,3), new_xyz (B,S,3) -> idx (B, S, nsample) int32."""
    # TODO(synk): a centroid with zero in-radius neighbours would yield index N (clamped by
    # take_along_axis); cannot trigger here because every centroid is a dataset point.
    N = xyz_bn3.shape[1]
    sqr = jnp.sum((new_xyz_bs3[:, :, None, :] - xyz_bn3[:, None, :, :]) ** 2, axis=-1)
    mask = sqr <= radius * radius
    cand = jnp.where(mask, jnp.arange(N, dtype=jnp.int32)[None, None, :], N)
    cand = jnp.sort(cand, axis=-1)[:, :, :nsample]
    first = cand[:, :, 0:1]
    return jnp.where(cand == N, first, cand).astype(jnp.int32)


def grouping_operation_cl(points_bnc, idx_bsk):
    """Channels-last gather: points (B, N, C), idx (B, S, K) -> (B, S, K, C)."""
    B, _, C = points_bnc.shape
    _, S, K = idx_bsk.shape
    flat = idx_bsk.reshape(B, S * K, 1).astype(jnp.int32)
    g = jnp.take_along_axis(points_bnc, flat, axis=1)        # (B, S*K, C)
    return g.reshape(B, S, K, C)


def sample_and_group(xyz, points, npoint, nsample, radius, use_xyz=True):
    """xyz (B,3,N), points (B,f,N) -> new_xyz (B,3,npoint), parts: list of (B,P,S,c) groups.

    Point features are cast to bf16 BEFORE the (largest) gather so the gather moves half the
    bytes; the xyz group is centered in f32 and cast later inside the single concat pass.
    """
    xyz_cl = jnp.transpose(xyz, (0, 2, 1))                   # (B, N, 3)  (small, f32)
    fps_idx = furthest_point_sample(xyz_cl, npoint)          # (B, npoint)
    new_xyz_cl = jnp.take_along_axis(xyz_cl, fps_idx[:, :, None], axis=1)  # (B, npoint, 3)
    idx = ball_query(radius, nsample, xyz_cl, new_xyz_cl)    # (B, npoint, nsample)
    grouped_xyz = grouping_operation_cl(xyz_cl, idx) - new_xyz_cl[:, :, None, :]  # f32 center
    parts = [grouped_xyz]
    if points is not None:
        points_cl = jnp.transpose(points, (0, 2, 1)).astype(jnp.bfloat16)  # bf16 gather source
        grouped_pts = grouping_operation_cl(points_cl, idx)  # (B, npoint, nsample, f) bf16
        parts = [grouped_xyz, grouped_pts] if use_xyz else [grouped_pts]
    new_xyz = jnp.transpose(new_xyz_cl, (0, 2, 1))           # (B, 3, npoint) PyTorch layout
    return new_xyz, parts


def sample_and_group_all(xyz, points, use_xyz=True):
    """xyz (B,3,N), points (B,f,N) -> new_xyz (B,3,1), parts with P == 1."""
    B = xyz.shape[0]
    new_xyz = jnp.zeros((B, 3, 1), jnp.float32)
    grouped_xyz = jnp.transpose(xyz, (0, 2, 1))[:, None, :, :]            # (B, 1, N, 3)
    parts = [grouped_xyz]
    if points is not None:
        pts = jnp.transpose(points, (0, 2, 1)).astype(jnp.bfloat16)[:, None, :, :]
        parts = [grouped_xyz, pts] if use_xyz else [pts]
    return new_xyz, parts


def _prep_features(parts, cin_pad):
    """Concat channel groups, append the constant-1 lane + zero padding, cast to bf16.

    Single materialization of the (largest) grouped activation: the gathers, the bf16 cast,
    the channel pad and the bias-carrier lane all land in one concat output.
    """
    B, P, S = parts[0].shape[:3]
    cin = sum(int(p.shape[-1]) for p in parts)
    segs = [p.astype(jnp.bfloat16) for p in parts]
    segs.append(jnp.ones((B, P, S, 1), jnp.bfloat16))        # constant-1 lane: bias via MXU
    pad = cin_pad - cin - 1
    if pad > 0:
        segs.append(jnp.zeros((B, P, S, pad), jnp.bfloat16))
    return jnp.concatenate(segs, axis=-1)                    # (B, P, S, cin_pad) bf16


# ----------------------------------------------------------------------------
# Pallas kernel: stacked (1x1 conv, bias folded into MXU, bf16 ReLU) + running max
# ----------------------------------------------------------------------------
def _make_mlp_max_kernel(need_bias_flags, tp, ts):
    """Kernel over one (tp points x ts samples) row tile; max accumulates over grid axis 2."""
    def kernel(*refs):
        x_ref, o_ref = refs[0], refs[-1]
        h = x_ref[0]                                          # (tp*ts, Cin_pad) bf16
        for l, need_bias in enumerate(need_bias_flags):
            w = refs[1 + 2 * l][...]                          # (C_in, C_out_pad) bf16
            acc = jnp.dot(h, w, preferred_element_type=jnp.float32)   # MXU, f32 accumulate
            h = acc.astype(jnp.bfloat16)                      # epilogue in bf16 (2 elem/lane)
            if need_bias:                                     # bias otherwise folded into MXU
                h = h + refs[2 + 2 * l][...]
            h = jnp.maximum(h, 0.0)                           # bf16 ReLU
        c = h.shape[-1]
        # rows are point-major (row = p*ts + samp): max over the ts contiguous sample rows.
        part = jnp.max(h.reshape(tp, ts, c), axis=1)          # (tp, Cout_pad) bf16

        j = pl.program_id(2)                                  # sample-tile reduction axis

        @pl.when(j == 0)
        def _():
            o_ref[0] = part

        @pl.when(j > 0)
        def _():
            o_ref[0] = jnp.maximum(o_ref[0], part)
    return kernel


def _vmem_limit_bytes():
    """Generation-aware VMEM limit: ~48 MiB on 64 MiB parts (v7x), 96 MiB on 128 MiB parts."""
    cap = 128 * 1024 * 1024
    try:
        info = pltpu.get_tpu_info()
        cap = int(getattr(info, "vmem_capacity_bytes", cap) or cap)
    except Exception:
        pass
    if cap <= 64 * 1024 * 1024:
        return 48 * 1024 * 1024
    return 96 * 1024 * 1024


def _row_budget(cin_pad, co_pads, weight_bytes, vmem_limit):
    """Activation rows per tile so the live set fits the VMEM limit with headroom."""
    # per row: double-buffered bf16 input block + worst layer's (f32 acc + bf16 in + bf16 out)
    per_row = 4 * cin_pad + 8 * max(co_pads)
    reserve = 2 * weight_bytes + 4 * 1024 * 1024              # resident weights + out tiles + scratch
    budget = int(vmem_limit * 0.7) - reserve
    rows = max(budget, per_row * 8) // per_row
    return int(min(rows, 8192))


def _pick_tp(P, cap):
    """Largest point-tile <= cap: prefer a multiple-of-8 divisor of P, else pad P up."""
    cap = min(cap, P)
    if cap >= P:
        return P
    cap8 = (cap // 8) * 8
    if cap8 < 8:
        return min(8, P)
    best = 0
    for tp in range(cap8, 7, -8):
        if P % tp == 0:
            best = tp
            break
    if best and best * 2 >= cap8:
        return best                                           # divisor: no P padding needed
    return cap8                                               # accept padding P up


def _pick_tiles(P, S, row_budget):
    """Returns (tp, ts, P_pad, S_pad); block rows = tp*ts, grid = (P_pad//tp, S_pad//ts)."""
    if P == 1:
        # group_all path: tile the sample axis, running-max accumulate across grid steps.
        ts = max(8, (min(row_budget, _round_up(S, 8)) // 8) * 8)
        S_pad = _round_up(S, ts)
        return 1, ts, 1, S_pad
    # normal SA path: whole (padded) sample axis per step, tile over points.
    # TODO(synk): if S_pad alone exceeds the row budget with P > 1 the tile overshoots the
    #   budget (contiguous-row blocks can't mix point- and sample-tiling); rare for SA configs.
    S_pad = _round_up(S, 8)
    cap = max(1, row_budget // S_pad)
    tp = _pick_tp(P, cap)
    P_pad = _round_up(P, tp)
    return tp, S_pad, P_pad, S_pad


def mlp_conv_max(x_bpsc, params, need_bias, out_channels, row_budget_override=None):
    """x (B,P,S,Cin_pad) bf16 (padded, constant-1 lane set) -> (B, out_channels, P) f32."""
    B, P, S, Cin_pad = x_bpsc.shape
    co_pads = [int(w.shape[1]) for w, _ in params]
    Cout_pad = co_pads[-1]
    weight_bytes = sum(int(w.size) * 2 + int(b.size) * 2 for w, b in params)

    vmem_limit = _vmem_limit_bytes()
    if row_budget_override is not None:
        row_budget = int(row_budget_override)
    else:
        row_budget = _row_budget(Cin_pad, co_pads, weight_bytes, vmem_limit)
    tp, ts, P_pad, S_pad = _pick_tiles(P, S, row_budget)

    if P_pad > P or S_pad > S:
        # padded rows are all-zero; ReLU outputs are >= 0 so they never win the max, and
        # padded point rows are sliced off below.
        x_bpsc = jnp.pad(x_bpsc, ((0, 0), (0, P_pad - P), (0, S_pad - S), (0, 0)))
    x = x_bpsc.reshape(B, P_pad * S_pad, Cin_pad)             # point-major rows (free reshape)
    P_tiles, S_tiles = P_pad // tp, S_pad // ts

    in_specs = [pl.BlockSpec((1, tp * ts, Cin_pad),
                             lambda b, t, j: (b, t * S_tiles + j, 0))]
    args = [x]
    for (w, bias) in params:
        ci, co = w.shape
        # TODO(synk): on v7x, single-buffer these resident specs (pipeline_mode=pl.Buffered(1))
        #   once validated; the constant index_map makes double-buffering pure VMEM waste.
        in_specs.append(pl.BlockSpec((ci, co), lambda b, t, j: (0, 0)))
        in_specs.append(pl.BlockSpec((1, co), lambda b, t, j: (0, 0)))
        args += [w, bias]

    flops = 2 * B * P_pad * S_pad * sum(int(w.shape[0]) * int(w.shape[1]) for w, _ in params)
    bytes_accessed = int(x.size) * 2 + weight_bytes + B * P_pad * Cout_pad * 2

    out = pl.pallas_call(
        _make_mlp_max_kernel(tuple(need_bias), tp, ts),
        out_shape=jax.ShapeDtypeStruct((B, P_pad, Cout_pad), jnp.bfloat16),
        grid=(B, P_tiles, S_tiles),
        in_specs=in_specs,
        out_specs=pl.BlockSpec((1, tp, Cout_pad), lambda b, t, j: (b, t, 0)),
        compiler_params=pltpu.CompilerParams(
            dimension_semantics=("parallel", "parallel", "arbitrary"),
            vmem_limit_bytes=vmem_limit),
        cost_estimate=pl.CostEstimate(
            flops=int(flops), transcendentals=0, bytes_accessed=int(bytes_accessed)),
    )(*args)                                                  # (B, P_pad, Cout_pad) bf16

    out = out[:, :P, :out_channels]                           # drop lane / point padding
    # TODO(synk): drop this relayout if downstream accepts (B, P, C); an in-kernel transposed
    #   store (block (1, Cout_pad, tp)) would also remove it but needs tp lane-density care.
    return jnp.transpose(out, (0, 2, 1)).astype(jnp.float32)  # (B, out_channels, P)


def _mlp_conv_max_reference(x_bpsc, params, need_bias, out_channels):
    """Pure-JAX emulation of the Pallas kernel (same dtypes/ordering) for correctness checks."""
    B, P, S, C = x_bpsc.shape
    h = x_bpsc.reshape(B, P * S, C)
    for (w, b), nb in zip(params, need_bias):
        acc = lax.dot_general(h, w, (((2,), (0,)), ((), ())),
                              preferred_element_type=jnp.float32)
        h = acc.astype(jnp.bfloat16)
        if nb:
            h = h + b
        h = jnp.maximum(h, 0.0)
    co = h.shape[-1]
    out = jnp.max(h.reshape(B, P, S, co), axis=2)[:, :, :out_channels]
    return jnp.transpose(out, (0, 2, 1)).astype(jnp.float32)


# ----------------------------------------------------------------------------
# Module
# ----------------------------------------------------------------------------
class PointNetSAModule:
    def __init__(self, npoint, nsample, radius, in_channel, mlp,
                 if_bn=True, group_all=False, use_xyz=True, key=None):
        self.npoint, self.nsample, self.radius = npoint, nsample, radius
        self.group_all, self.use_xyz = group_all, use_xyz
        self.out_channels = mlp[-1]

        cin = in_channel + (3 if use_xyz else 0)
        cin_pad = _round_up(cin + 1, 16)                      # +1 constant lane, bf16 packing
        self.cin, self.cin_pad = cin, cin_pad

        key = jax.random.PRNGKey(1234) if key is None else key
        eps = 1e-5
        ones_in = cin                                         # x[..., cin] == 1.0
        in_width = cin_pad
        self.params, self.layer_need_bias = [], []
        n = len(mlp)
        for i, co in enumerate(mlp):
            is_last = (i == n - 1)
            co_pad = _round_up(co, 128)                       # lane-dense every layer
            real_in = cin if i == 0 else mlp[i - 1]

            key, kw, kb = jax.random.split(key, 3)
            w = jax.random.normal(kw, (real_in, co), jnp.float32) * (1.0 / math.sqrt(real_in))
            b = jax.random.normal(kb, (co,), jnp.float32) * 0.01
            gamma = jnp.ones((co,), jnp.float32)
            beta = jnp.zeros((co,), jnp.float32)
            run_mean = jnp.zeros((co,), jnp.float32)
            run_var = jnp.ones((co,), jnp.float32)
            if if_bn:
                scale = gamma / jnp.sqrt(run_var + eps)
                eff_bias = scale * (b - run_mean) + beta
            else:
                scale = jnp.ones((co,), jnp.float32)
                eff_bias = b
            w_eff = w * scale[None, :]                        # fold BN scale into weight columns

            w_pad = jnp.zeros((in_width, co_pad), jnp.float32)
            w_pad = w_pad.at[:real_in, :co].set(w_eff)
            bias_pad = jnp.zeros((co_pad,), jnp.float32)
            need_bias = ones_in is None
            if need_bias:
                bias_pad = bias_pad.at[:co].set(eff_bias)     # epilogue bias (bf16 add)
            else:
                w_pad = w_pad.at[ones_in, :co].set(eff_bias)  # bias folded into the MXU

            # propagate a constant-1 lane through a spare padded column for the next layer
            ones_out = None
            if (not is_last) and co_pad > co:
                ones_out = co
                if ones_in is not None:
                    w_pad = w_pad.at[ones_in, ones_out].set(1.0)
                else:
                    bias_pad = bias_pad.at[ones_out].set(1.0)

            self.params.append((w_pad.astype(jnp.bfloat16),
                                bias_pad.reshape(1, co_pad).astype(jnp.bfloat16)))
            self.layer_need_bias.append(bool(need_bias))
            ones_in, in_width = ones_out, co_pad

    def __call__(self, xyz, points):
        """xyz (B,3,N), points (B,f,N) -> new_xyz (B,3,P), new_points (B,mlp[-1],P)."""
        if self.group_all:
            new_xyz, parts = sample_and_group_all(xyz, points, self.use_xyz)
        else:
            new_xyz, parts = sample_and_group(
                xyz, points, self.npoint, self.nsample, self.radius, self.use_xyz)
        x = _prep_features(parts, self.cin_pad)               # (B,P,S,cin_pad) bf16
        new_points = mlp_conv_max(x, self.params, self.layer_need_bias, self.out_channels)
        return new_xyz, new_points


# ----------------------------------------------------------------------------
if __name__ == "__main__":
    B, N, F = 2, 64, 4
    npoint, nsample, radius = 16, 8, 0.8
    mlp = [32, 64]

    key = jax.random.PRNGKey(0)
    kx, kp = jax.random.split(key)
    xyz = jax.random.normal(kx, (B, 3, N), jnp.float32)
    points = jax.random.normal(kp, (B, F, N), jnp.float32)

    # --- normal SA path (bias fully folded into the MXU on every layer) ---
    module = PointNetSAModule(npoint, nsample, radius, in_channel=F, mlp=mlp,
                              if_bn=True, group_all=False, use_xyz=True)
    fwd = jax.jit(module.__call__)
    new_xyz, new_points = fwd(xyz, points)
    jax.block_until_ready((new_xyz, new_points))
    assert new_xyz.shape == (B, 3, npoint), new_xyz.shape
    assert new_points.shape == (B, mlp[-1], npoint), new_points.shape

    _, parts = sample_and_group(xyz, points, npoint, nsample, radius, True)
    x = _prep_features(parts, module.cin_pad)
    ref = _mlp_conv_max_reference(x, module.params, module.layer_need_bias, module.out_channels)
    jax.block_until_ready(ref)
    tol = 1e-2 * (1.0 + float(jnp.max(jnp.abs(ref))))
    err = float(jnp.max(jnp.abs(new_points - ref)))
    assert err < tol, f"SA path: max abs error {err} vs tol {tol}"

    # --- group_all path (P == 1) with a 128-wide intermediate (exercises the bf16 bias add) ---
    mlp_all = [128, 64]
    module_all = PointNetSAModule(None, None, None, in_channel=F, mlp=mlp_all,
                                  if_bn=True, group_all=True, use_xyz=True)
    fwd_all = jax.jit(module_all.__call__)
    nx_all, np_all = fwd_all(xyz, points)
    jax.block_until_ready((nx_all, np_all))
    assert nx_all.shape == (B, 3, 1), nx_all.shape
    assert np_all.shape == (B, mlp_all[-1], 1), np_all.shape

    _, parts_all = sample_and_group_all(xyz, points, True)
    xa = _prep_features(parts_all, module_all.cin_pad)
    ref_a = _mlp_conv_max_reference(xa, module_all.params, module_all.layer_need_bias,
                                    module_all.out_channels)
    jax.block_until_ready(ref_a)
    tol_a = 1e-2 * (1.0 + float(jnp.max(jnp.abs(ref_a))))
    err_a = float(jnp.max(jnp.abs(np_all - ref_a)))
    assert err_a < tol_a, f"group_all path: max abs error {err_a} vs tol {tol_a}"

    # --- force sample-axis tiling (S_tiles > 1) to exercise the running-max accumulator ---
    got_t = mlp_conv_max(xa, module_all.params, module_all.layer_need_bias,
                         module_all.out_channels, row_budget_override=16)
    jax.block_until_ready(got_t)
    err_t = float(jnp.max(jnp.abs(got_t - ref_a)))
    assert err_t < tol_a, f"tiled-reduction path: max abs error {err_t} vs tol {tol_a}"

    print("KERNEL_OK")
</pallas_src>

<mosaic_0001>
module attributes {stable_mosaic.version = 11 : i64} {
  func.func @kernel(%arg0: i32, %arg1: i32, %arg2: i32, %arg3: memref<1x128x16xbf16, #tpu.memory_space<vmem>>, %arg4: memref<16x128xbf16, #tpu.memory_space<vmem>>, %arg5: memref<1x128xbf16, #tpu.memory_space<vmem>>, %arg6: memref<128x128xbf16, #tpu.memory_space<vmem>>, %arg7: memref<1x128xbf16, #tpu.memory_space<vmem>>, %arg8: memref<1x16x128xbf16, #tpu.memory_space<vmem>>) attributes {dimension_semantics = [#tpu.dimension_semantics<parallel>, #tpu.dimension_semantics<parallel>, #tpu.dimension_semantics<arbitrary>], iteration_bounds = array<i64: 2, 1, 1>, scalar_prefetch = 0 : i64, scratch_operands = 0 : i64, tpu.core_type = #tpu.core_type<tc>, window_params = [{transform_indices = @transform_0, window_bounds = array<i64: 1, 128, 16>}, {pipeline_mode = #tpu.pipeline_mode<synchronous>, transform_indices = @transform_1, window_bounds = array<i64: 16, 128>}, {pipeline_mode = #tpu.pipeline_mode<synchronous>, transform_indices = @transform_2, window_bounds = array<i64: 1, 128>}, {pipeline_mode = #tpu.pipeline_mode<synchronous>, transform_indices = @transform_3, window_bounds = array<i64: 128, 128>}, {pipeline_mode = #tpu.pipeline_mode<synchronous>, transform_indices = @transform_4, window_bounds = array<i64: 1, 128>}, {transform_indices = @transform_5, window_bounds = array<i64: 1, 16, 128>}]} {
    %c0 = arith.constant 0 : index
    %c0_0 = arith.constant 0 : index
    %c0_1 = arith.constant 0 : index
    %0 = vector.load %arg3[%c0, %c0_0, %c0_1] : memref<1x128x16xbf16, #tpu.memory_space<vmem>>, vector<1x128x16xbf16>
    %1 = vector.shape_cast %0 : vector<1x128x16xbf16> to vector<128x16xbf16>
    %c0_2 = arith.constant 0 : index
    %c0_3 = arith.constant 0 : index
    %2 = vector.load %arg4[%c0_2, %c0_3] : memref<16x128xbf16, #tpu.memory_space<vmem>>, vector<16x128xbf16>
    %cst = arith.constant dense<0.000000e+00> : vector<128x128xf32>
    %3 = tpu.matmul %1, %2, %cst {dimension_numbers = #tpu.dot_dimension_numbers<[1], [0], [0], [1], [0, 0, 1, 1], [], []>} : vector<128x16xbf16>, vector<16x128xbf16>, vector<128x128xf32> -> vector<128x128xf32>
    %4 = arith.truncf %3 : vector<128x128xf32> to vector<128x128xbf16>
    %cst_4 = arith.constant 0.000000e+00 : bf16
    %5 = vector.broadcast %cst_4 : bf16 to vector<128x128xbf16>
    %6 = arith.maximumf %4, %5 : vector<128x128xbf16>
    %c0_5 = arith.constant 0 : index
    %c0_6 = arith.constant 0 : index
    %7 = vector.load %arg6[%c0_5, %c0_6] : memref<128x128xbf16, #tpu.memory_space<vmem>>, vector<128x128xbf16>
    %cst_7 = arith.constant dense<0.000000e+00> : vector<128x128xf32>
    %8 = tpu.matmul %6, %7, %cst_7 {dimension_numbers = #tpu.dot_dimension_numbers<[1], [0], [0], [1], [0, 0, 1, 1], [], []>} : vector<128x128xbf16>, vector<128x128xbf16>, vector<128x128xf32> -> vector<128x128xf32>
    %9 = arith.truncf %8 : vector<128x128xf32> to vector<128x128xbf16>
    %cst_8 = arith.constant 0.000000e+00 : bf16
    %10 = vector.broadcast %cst_8 : bf16 to vector<128x128xbf16>
    %11 = arith.maximumf %9, %10 : vector<128x128xbf16>
    %12 = vector.shape_cast %11 : vector<128x128xbf16> to vector<16x8x128xbf16>
    %cst_9 = arith.constant dense<0xFF80> : vector<16x128xbf16>
    %13 = vector.multi_reduction <maximumf>, %12, %cst_9 [1] : vector<16x8x128xbf16> to vector<16x128xbf16>
    %c0_i32 = arith.constant 0 : i32
    %14 = arith.cmpi eq, %arg2, %c0_i32 : i32
    %15 = arith.extui %14 : i1 to i32
    %c0_i32_10 = arith.constant 0 : i32
    %16 = arith.cmpi ne, %15, %c0_i32_10 : i32
    scf.if %16 {
      %c0_13 = arith.constant 0 : index
      %c0_14 = arith.constant 0 : index
      %c0_15 = arith.constant 0 : index
      %20 = vector.load %arg8[%c0_13, %c0_14, %c0_15] : memref<1x16x128xbf16, #tpu.memory_space<vmem>>, vector<1x16x128xbf16>
      %21 = vector.shape_cast %20 : vector<1x16x128xbf16> to vector<16x128xbf16>
      %22 = vector.shape_cast %13 : vector<16x128xbf16> to vector<1x16x128xbf16>
      tpu.vector_store %arg8[%c0_13, %c0_14, %c0_15], %22 {strides = array<i32>} : memref<1x16x128xbf16, #tpu.memory_space<vmem>>, vector<1x16x128xbf16>,
    } else {
    }
    %c0_i32_11 = arith.constant 0 : i32
    %17 = arith.cmpi sgt, %arg2, %c0_i32_11 : i32
    %18 = arith.extui %17 : i1 to i32
    %c0_i32_12 = arith.constant 0 : i32
    %19 = arith.cmpi ne, %18, %c0_i32_12 : i32
    scf.if %19 {
      %c0_13 = arith.constant 0 : index
      %c0_14 = arith.constant 0 : index
      %c0_15 = arith.constant 0 : index
      %20 = vector.load %arg8[%c0_13, %c0_14, %c0_15] : memref<1x16x128xbf16, #tpu.memory_space<vmem>>, vector<1x16x128xbf16>
      %21 = vector.shape_cast %20 : vector<1x16x128xbf16> to vector<16x128xbf16>
      %22 = arith.maximumf %21, %13 : vector<16x128xbf16>
      %c0_16 = arith.constant 0 : index
      %c0_17 = arith.constant 0 : index
      %c0_18 = arith.constant 0 : index
      %23 = vector.load %arg8[%c0_16, %c0_17, %c0_18] : memref<1x16x128xbf16, #tpu.memory_space<vmem>>, vector<1x16x128xbf16>
      %24 = vector.shape_cast %23 : vector<1x16x128xbf16> to vector<16x128xbf16>
      %25 = vector.shape_cast %22 : vector<16x128xbf16> to vector<1x16x128xbf16>
      tpu.vector_store %arg8[%c0_16, %c0_17, %c0_18], %25 {strides = array<i32>} : memref<1x16x128xbf16, #tpu.memory_space<vmem>>, vector<1x16x128xbf16>,
    } else {
    }
    return
  }
  func.func @transform_0(%arg0: i32, %arg1: i32, %arg2: i32) -> (i32, i32, i32) {
    %c1_i32 = arith.constant 1 : i32
    %0 = arith.muli %arg1, %c1_i32 : i32
    %1 = arith.addi %0, %arg2 : i32
    %c0_i32 = arith.constant 0 : i32
    %c0_i32_0 = arith.constant 0 : i32
    return %arg0, %1, %c0_i32 : i32, i32, i32
  }
  func.func @transform_1(%arg0: i32, %arg1: i32, %arg2: i32) -> (i32, i32) {
    %c0_i32 = arith.constant 0 : i32
    %c0_i32_0 = arith.constant 0 : i32
    %c0_i32_1 = arith.constant 0 : i32
    return %c0_i32, %c0_i32_0 : i32, i32
  }
  func.func @transform_2(%arg0: i32, %arg1: i32, %arg2: i32) -> (i32, i32) {
    %c0_i32 = arith.constant 0 : i32
    %c0_i32_0 = arith.constant 0 : i32
    %c0_i32_1 = arith.constant 0 : i32
    return %c0_i32, %c0_i32_0 : i32, i32
  }
  func.func @transform_3(%arg0: i32, %arg1: i32, %arg2: i32) -> (i32, i32) {
    %c0_i32 = arith.constant 0 : i32
    %c0_i32_0 = arith.constant 0 : i32
    %c0_i32_1 = arith.constant 0 : i32
    return %c0_i32, %c0_i32_0 : i32, i32
  }
  func.func @transform_4(%arg0: i32, %arg1: i32, %arg2: i32) -> (i32, i32) {
    %c0_i32 = arith.constant 0 : i32
    %c0_i32_0 = arith.constant 0 : i32
    %c0_i32_1 = arith.constant 0 : i32
    return %c0_i32, %c0_i32_0 : i32, i32
  }
  func.func @transform_5(%arg0: i32, %arg1: i32, %arg2: i32) -> (i32, i32, i32) {
    %c0_i32 = arith.constant 0 : i32
    %c0_i32_0 = arith.constant 0 : i32
    return %arg0, %arg1, %c0_i32 : i32, i32, i32
  }
}

</mosaic_0001>

<llo_original>
// kernel: custom-call.8
$region0: #{custom-call.8}
  %s0 = inlined_call_operand.vmem [shape: f32[2,64], index: 0, kind: output, shape index: {}]

// kernel: a_call__.1
$region0: #{a_call__.1}
  #allocation0 [shape = 'u32[]', space=smem, size = 0x4, offset = 0x4, fixed_abs, tag = 'smem constant byte address 0x4 - core index']
  #allocation1 [shape = 'u32[144,128]{1,0:T(1,128)}', space=vmem, size = 0x12000, scoped, tag = 'internal scratch']
  %s0 = inlined_call_operand.hbm [shape: bf16[2,128,16], index: 0, kind: input, shape index: {}]
  %s1 = inlined_call_operand.hbm [shape: bf16[16,128], index: 1, kind: input, shape index: {}]
  %s2 = inlined_call_operand.hbm [shape: bf16[1,128], index: 2, kind: input, shape index: {}, may-alias: {2,4}]
  %s3 = inlined_call_operand.hbm [shape: bf16[128,128], index: 3, kind: input, shape index: {}]
  %s4 = inlined_call_operand.hbm [shape: bf16[1,128], index: 4, kind: input, shape index: {}, may-alias: {2,4}]
  %s5 = inlined_call_operand.hbm [shape: bf16[2,16,128], index: 5, kind: output, shape index: {}]
  %s6 = sld [smem:[#allocation0]]
  $region81: #{a_call__.1} parent=0
    _
  %s8 = ssub.s32 1, %s6
  %s9 = scalar_select 0, %s8, %s6
  $region1: #{a_call__.1} parent=0
    #allocation2 [shape = 'u8[65536]{0}', space=vmem, size = 0x10000, scoped, tag = 'input window, operand 0']
    #allocation3 [shape = 's32[2]{0}', space=sflag, size = 0x8, scoped, tag = 'scoped memory for a_call__.1']
    #allocation4 [shape = 's32[2]{0}', space=sflag, size = 0x8, scoped, tag = 'scoped memory for a_call__.1']
    #allocation5 [shape = 'u8[4096]{0}', space=vmem, size = 0x1000, scoped, tag = 'input window, operand 1, single buffered']
    #allocation6 [shape = 's32[1]{0}', space=sflag, size = 0x4, scoped, tag = 'scoped memory for a_call__.1']
    #allocation7 [shape = 'u8[512]{0}', space=vmem, size = 0x400, scoped, tag = 'input window, operand 2, single buffered']
    #allocation8 [shape = 'u8[32768]{0}', space=vmem, size = 0x8000, scoped, tag = 'input window, operand 3, single buffered']
    #allocation9 [shape = 's32[1]{0}', space=sflag, size = 0x4, scoped, tag = 'scoped memory for a_call__.1']
    #allocation10 [shape = 'u8[512]{0}', space=vmem, size = 0x400, scoped, tag = 'input window, operand 4, single buffered']
    #allocation11 [shape = 'u8[8192]{0}', space=vmem, size = 0x2000, scoped, tag = 'output window, operand 0']
    %10 = vsyncpa [#allocation3], 0
    %s11 = scalar_lea.sflag [#allocation3], 1
    %12 = vsyncpa %s11, 0
    %13 = vsyncpa [#allocation6], 0
    %14 = vsyncpa [#allocation9], 0
    %15 = vsyncpa [#allocation4], 0
    %s16 = scalar_lea.sflag [#allocation4], 1
    %17 = vsyncpa %s16, 0
    loop: start=0, step=1, limit=4
    $region2: #{a_call__.1} parent=1 // loop_pre_header
      _
    $region3: #{a_call__.1} parent=1 // loop_header
      %s19 = sphi 0, %s23
      %p20 = scmp.ge.s32.totalorder %s19, 4
      %s26 = sphi 0, %s45
      %s27 = sphi 0, %s41
      %s28 = sphi 0, %s37
      %s29 = sphi 0, %s26
      %s30 = sphi 0, %s27
      %s31 = sphi 0, %s28
      %s32 = sphi 0, %s29
      %s33 = sphi 0, %s30
      %s34 = sphi 0, %s31
      %s52 = sphi 0, %s54
      %s55 = sphi 0, %s52
      %s56 = sphi 0, %s55
      %s72 = sphi 0, %s56
      %s76 = sphi 0, %s76
      %s78 = sphi 0, %s76
      %s79 = sphi 0, %s78
      %s93 = sphi 0, %s79
      %s97 = sphi 0, %s97
      %s99 = sphi 0, %s97
      %s100 = sphi 0, %s99
      %s114 = sphi 0, %s100
      %s118 = sphi 0, %s118
      %s120 = sphi 0, %s118
      %s121 = sphi 0, %s120
      %s135 = sphi 0, %s121
      %s139 = sphi 0, %s139
      %s141 = sphi 0, %s139
      %s142 = sphi 0, %s141
      %s156 = sphi 0, %s142
      %s164 = sphi 0, %s166
      %s167 = sphi 0, %s164
      %s168 = sphi 0, %s167
      %s184 = sphi 0, %s168
    $region4: #{a_call__.1} parent=1 // loop_header_branch
      %22 = sbr.rel (%p20) target = $region8
    $region5: #{a_call__.1} parent=1 // loop_body
      %s24 = ssub.s32 %s19, 1
      %s25 = ssub.s32 %s19, 2
      %s35 = sadd.s32 1, %s28
      %p36 = scmp.ge.s32.totalorder %s35, 1
      %s37 = scalar_select %p36, 0, %s35
      %s38 = sadd.s32 1, %s27
      %s39 = scalar_select %p36, %s38, %s27
      %p40 = scmp.ge.s32.totalorder %s39, 1
      %s41 = scalar_select %p40, 0, %s39
      %s42 = sadd.s32 1, %s26
      %s43 = scalar_select %p40, %s42, %s26
      %p44 = scmp.ge.s32.totalorder %s43, 2
      %s45 = scalar_select %p44, 0, %s43
      %s46 = sadd.s32 %s27, %s28
      %s47 = sadd.s32 %s41, %s37
      %s48 = ssub.s32 %s26, %s45
      %s49 = ssub.s32 %s46, %s47
      %s50 = sor.u32 %s48, %s49
      %p51 = scmp.eq.s32.totalorder %s50, 0
      %s53 = sadd.s32 %s52, 1
      %s54 = scalar_select %p51, %s52, %s53
      %p57 = pneg %p51
      %p58 = scmp.eq.s32.totalorder %s19, 1
      %p59 = por %p57, %p58
      %p60 = scmp.ne.s32.totalorder %s52, %s55
      %p61 = scmp.eq.s32.totalorder %s19, 0
      %p62 = por %p60, %p61
      %p63 = scmp.ne.s32.totalorder %s52, %s55
      %p64 = scmp.eq.s32.totalorder %s24, 1
      %p65 = por %p63, %p64
      %p66 = scmp.ne.s32.totalorder %s55, %s56
      %p67 = scmp.eq.s32.totalorder %s24, 0
      %p68 = por %p66, %p67
      %p69 = scmp.ne.s32.totalorder %s55, %s56
      %p70 = scmp.eq.s32.totalorder %s25, 1
      %p71 = por %p69, %p70
      %p73 = scmp.ne.s32.totalorder %s56, %s72
      %p74 = scmp.eq.s32.totalorder %s25, 0
      %p75 = por %p73, %p74
      %s77 = sadd.s32 %s76, 1
      %p80 = scmp.eq.s32.totalorder %s19, 1
      %p81 = scmp.ne.s32.totalorder %s76, %s78
      %p82 = scmp.eq.s32.totalorder %s19, 0
      %p83 = por %p81, %p82
      %p84 = scmp.ne.s32.totalorder %s76, %s78
      %p85 = scmp.eq.s32.totalorder %s24, 1
      %p86 = por %p84, %p85
      %p87 = scmp.ne.s32.totalorder %s78, %s79
      %p88 = scmp.eq.s32.totalorder %s24, 0
      %p89 = por %p87, %p88
      %p90 = scmp.ne.s32.totalorder %s78, %s79
      %p91 = scmp.eq.s32.totalorder %s25, 1
      %p92 = por %p90, %p91
      %p94 = scmp.ne.s32.totalorder %s79, %s93
      %p95 = scmp.eq.s32.totalorder %s25, 0
      %p96 = por %p94, %p95
      %s98 = sadd.s32 %s97, 1
      %p101 = scmp.eq.s32.totalorder %s19, 1
      %p102 = scmp.ne.s32.totalorder %s97, %s99
      %p103 = scmp.eq.s32.totalorder %s19, 0
      %p104 = por %p102, %p103
      %p105 = scmp.ne.s32.totalorder %s97, %s99
      %p106 = scmp.eq.s32.totalorder %s24, 1
      %p107 = por %p105, %p106
      %p108 = scmp.ne.s32.totalorder %s99, %s100
      %p109 = scmp.eq.s32.totalorder %s24, 0
      %p110 = por %p108, %p109
      %p111 = scmp.ne.s32.totalorder %s99, %s100
      %p112 = scmp.eq.s32.totalorder %s25, 1
      %p113 = por %p111, %p112
      %p115 = scmp.ne.s32.totalorder %s100, %s114
      %p116 = scmp.eq.s32.totalorder %s25, 0
      %p117 = por %p115, %p116
      %s119 = sadd.s32 %s118, 1
      %p122 = scmp.eq.s32.totalorder %s19, 1
      %p123 = scmp.ne.s32.totalorder %s118, %s120
      %p124 = scmp.eq.s32.totalorder %s19, 0
      %p125 = por %p123, %p124
      %p126 = scmp.ne.s32.totalorder %s118, %s120
      %p127 = scmp.eq.s32.totalorder %s24, 1
      %p128 = por %p126, %p127
      %p129 = scmp.ne.s32.totalorder %s120, %s121
      %p130 = scmp.eq.s32.totalorder %s24, 0
      %p131 = por %p129, %p130
      %p132 = scmp.ne.s32.totalorder %s120, %s121
      %p133 = scmp.eq.s32.totalorder %s25, 1
      %p134 = por %p132, %p133
      %p136 = scmp.ne.s32.totalorder %s121, %s135
      %p137 = scmp.eq.s32.totalorder %s25, 0
      %p138 = por %p136, %p137
      %s140 = sadd.s32 %s139, 1
      %p143 = scmp.eq.s32.totalorder %s19, 1
      %p144 = scmp.ne.s32.totalorder %s139, %s141
      %p145 = scmp.eq.s32.totalorder %s19, 0
      %p146 = por %p144, %p145
      %p147 = scmp.ne.s32.totalorder %s139, %s141
      %p148 = scmp.eq.s32.totalorder %s24, 1
      %p149 = por %p147, %p148
      %p150 = scmp.ne.s32.totalorder %s141, %s142
      %p151 = scmp.eq.s32.totalorder %s24, 0
      %p152 = por %p150, %p151
      %p153 = scmp.ne.s32.totalorder %s141, %s142
      %p154 = scmp.eq.s32.totalorder %s25, 1
      %p155 = por %p153, %p154
      %p157 = scmp.ne.s32.totalorder %s142, %s156
      %p158 = scmp.eq.s32.totalorder %s25, 0
      %p159 = por %p157, %p158
      %s160 = ssub.s32 %s26, %s45
      %s161 = ssub.s32 %s27, %s41
      %s162 = sor.u32 %s160, %s161
      %p163 = scmp.eq.s32.totalorder %s162, 0
      %s165 = sadd.s32 %s164, 1
      %s166 = scalar_select %p163, %s164, %s165
      %p169 = pneg %p163
      %p170 = scmp.eq.s32.totalorder %s19, 1
      %p171 = por %p169, %p170
      %p172 = scmp.ne.s32.totalorder %s164, %s167
      %p173 = scmp.eq.s32.totalorder %s19, 0
      %p174 = por %p172, %p173
      %p175 = scmp.ne.s32.totalorder %s164, %s167
      %p176 = scmp.eq.s32.totalorder %s24, 1
      %p177 = por %p175, %p176
      %p178 = scmp.ne.s32.totalorder %s167, %s168
      %p179 = scmp.eq.s32.totalorder %s24, 0
      %p180 = por %p178, %p179
      %p181 = scmp.ne.s32.totalorder %s167, %s168
      %p182 = scmp.eq.s32.totalorder %s25, 1
      %p183 = por %p181, %p182
      %p185 = scmp.ne.s32.totalorder %s168, %s184
      %p186 = scmp.eq.s32.totalorder %s25, 0
      %p187 = por %p185, %p186
      %p188 = scmp.le.s32.totalorder 1, %s19
      %p189 = scmp.lt.s32.totalorder %s19, 3
      %p190 = pnand %p188, %p189
      %p191 = pneg %p190
      // Predicated region
      $region9: #{a_call__.1} parent=5 // pred_check
        _
      $region10: #{a_call__.1} parent=5 // pred_check_branch
        %193 = sbr.rel (%p190) target = $region12
      $region11: #{a_call__.1} parent=5 // pred_region
        %s194 = ssub.s32 %s19, 1
        // Predicated region
        $region13: #{a_call__.1} parent=11 // pred_check
          %p195 = pneg %p89
        $region14: #{a_call__.1} parent=11 // pred_check_branch
          %197 = sbr.rel (%p195) target = $region16
        $region15: #{a_call__.1} parent=11 // pred_region
          %s199 = ssub.s32 128, 128
          %200 = vsyncadd [#allocation6], %s199
          %s201 = sshll.u32 [#allocation5], 4
          %s202 = int_to_ptr.vmem [resolvable:$true] %s201
          %207 = dma.hbm_to_vmem [thread:$0]  %s1, 128, %s202, [#allocation6], 64, 64, 4
        $region16: #{a_call__.1} parent=11 // pred_fallthru
          _
        // Predicated region
        $region17: #{a_call__.1} parent=11 // pred_check
          %p208 = pneg %p110
        $region18: #{a_call__.1} parent=11 // pred_check_branch
          %210 = sbr.rel (%p208) target = $region20
        $region19: #{a_call__.1} parent=11 // pred_region
          %s212 = ssub.s32 16, 16
          %213 = vsyncadd [#allocation6], %s212
          %s215 = sshll.u32 [#allocation7], 4
          %s216 = int_to_ptr.vmem [resolvable:$true] %s215
          %218 = dma.hbm_to_vmem [thread:$0]  %s2, 16, %s216, [#allocation6]
        $region20: #{a_call__.1} parent=11 // pred_fallthru
          _
        // Predicated region
        $region21: #{a_call__.1} parent=11 // pred_check
          %p219 = pneg %p131
        $region22: #{a_call__.1} parent=11 // pred_check_branch
          %221 = sbr.rel (%p219) target = $region24
        $region23: #{a_call__.1} parent=11 // pred_region
          %s223 = ssub.s32 1024, 1024
          %224 = vsyncadd [#allocation9], %s223
          %s225 = sshll.u32 [#allocation8], 4
          %s226 = int_to_ptr.vmem [resolvable:$true] %s225
          %231 = dma.hbm_to_vmem [thread:$0]  %s3, 1024, %s226, [#allocation9], 64, 64, 4
        $region24: #{a_call__.1} parent=11 // pred_fallthru
          _
        // Predicated region
        $region25: #{a_call__.1} parent=11 // pred_check
          %p232 = pneg %p152
        $region26: #{a_call__.1} parent=11 // pred_check_branch
          %234 = sbr.rel (%p232) target = $region28
        $region27: #{a_call__.1} parent=11 // pred_region
          %s236 = ssub.s32 16, 16
          %237 = vsyncadd [#allocation9], %s236
          %s239 = sshll.u32 [#allocation10], 4
          %s240 = int_to_ptr.vmem [resolvable:$true] %s239
          %242 = dma.hbm_to_vmem [thread:$0]  %s4, 16, %s240, [#allocation9]
        $region28: #{a_call__.1} parent=11 // pred_fallthru
          _
      $region12: #{a_call__.1} parent=5 // pred_fallthru
        _
      %p243 = scmp.lt.s32.totalorder %s19, 2
      // Predicated region
      $region29: #{a_call__.1} parent=5 // pred_check
        %p244 = pneg %p243
      $region30: #{a_call__.1} parent=5 // pred_check_branch
        %246 = sbr.rel (%p244) target = $region32
      $region31: #{a_call__.1} parent=5 // pred_region
        // Predicated region
        $region33: #{a_call__.1} parent=31 // pred_check
          %p247 = pneg %p62
        $region34: #{a_call__.1} parent=31 // pred_check_branch
          %249 = sbr.rel (%p247) target = $region36
        $region35: #{a_call__.1} parent=31 // pred_region
          %s250 = sand.u32 %s52, 1
          %s251 = scalar_lea.sflag [#allocation3], %s250
          %s252 = sand.u32 %s52, 1
          %s253 = smul.addr %s252, 64
          %s254 = scalar_lea.vmem [#allocation2], %s253
          %s255 = sadd.s32 %s27, %s28
          %s256 = smul.u32 16, %s255
          %s258 = ssub.s32 1024, 1024
          %259 = vsyncadd %s251, %s258
          %s260 = smul.addr %s26, 16
          %s261 = sadd.s32 %s256, %s260
          %s262 = smul.addr %s261, 64
          %s263 = scalar_lea.hbm %s0, %s262
          %s264 = sshll.u32 %s254, 4
          %s265 = int_to_ptr.vmem [resolvable:$true] %s264
          %270 = dma.hbm_to_vmem [thread:$0]  %s263, 1024, %s265, %s251, 64, 64, 4
        $region36: #{a_call__.1} parent=31 // pred_fallthru
          _
      $region32: #{a_call__.1} parent=5 // pred_fallthru
        _
      %p271 = scmp.le.s32.totalorder 1, %s19
      %p272 = scmp.lt.s32.totalorder %s19, 3
      %p273 = pnand %p271, %p272
      %p274 = pneg %p273
      // Predicated region
      $region37: #{a_call__.1} parent=5 // pred_check
        _
      $region38: #{a_call__.1} parent=5 // pred_check_branch
        %276 = sbr.rel (%p273) target = $region40
      $region39: #{a_call__.1} parent=5 // pred_region
        %s277 = ssub.s32 %s19, 1
        %s278 = sand.u32 %s55, 1
        %s279 = scalar_lea.sflag [#allocation3], %s278
        %s280 = sand.u32 %s55, 1
        %s281 = smul.addr %s280, 64
        %s282 = scalar_lea.vmem [#allocation2], %s281
        // Predicated region
        $region41: #{a_call__.1} parent=39 // pred_check
          %p283 = pneg %p68
        $region42: #{a_call__.1} parent=39 // pred_check_branch
          %285 = sbr.rel (%p283) target = $region44
        $region43: #{a_call__.1} parent=39 // pred_region
          %286 = dma.done %s279, 1024
        $region44: #{a_call__.1} parent=39 // pred_fallthru
          _
        // Predicated region
        $region45: #{a_call__.1} parent=39 // pred_check
          %p287 = pneg %p89
        $region46: #{a_call__.1} parent=39 // pred_check_branch
          %289 = sbr.rel (%p287) target = $region48
        $region47: #{a_call__.1} parent=39 // pred_region
          %290 = dma.done [#allocation6], 128
        $region48: #{a_call__.1} parent=39 // pred_fallthru
          _
        // Predicated region
        $region49: #{a_call__.1} parent=39 // pred_check
          %p291 = pneg %p110
        $region50: #{a_call__.1} parent=39 // pred_check_branch
          %293 = sbr.rel (%p291) target = $region52
        $region51: #{a_call__.1} parent=39 // pred_region
          %294 = dma.done [#allocation6], 16
        $region52: #{a_call__.1} parent=39 // pred_fallthru
          _
        // Predicated region
        $region53: #{a_call__.1} parent=39 // pred_check
          %p295 = pneg %p131
        $region54: #{a_call__.1} parent=39 // pred_check_branch
          %297 = sbr.rel (%p295) target = $region56
        $region55: #{a_call__.1} parent=39 // pred_region
          %298 = dma.done [#allocation9], 1024
        $region56: #{a_call__.1} parent=39 // pred_fallthru
          _
        // Predicated region
        $region57: #{a_call__.1} parent=39 // pred_check
          %p299 = pneg %p152
        $region58: #{a_call__.1} parent=39 // pred_check_branch
          %301 = sbr.rel (%p299) target = $region60
        $region59: #{a_call__.1} parent=39 // pred_region
          %302 = dma.done [#allocation9], 16
        $region60: #{a_call__.1} parent=39 // pred_fallthru
          _
        %s303 = sand.u32 %s55, 1
        %s304 = scalar_lea.sflag [#allocation3], %s303
        %s305 = sand.u32 %s55, 1
        %s306 = smul.addr %s305, 64
        %s307 = scalar_lea.vmem [#allocation2], %s306
        %p308 = pneg %p68
        %p309 = pneg %p65
        %p310 = pneg %p89
        %p311 = pneg %p86
        %p312 = pneg %p110
        %p313 = pneg %p107
        %p314 = pneg %p131
        %p315 = pneg %p128
        %p316 = pneg %p152
        %p317 = pneg %p149
        %p318 = pneg %p180
        %p319 = pneg %p177
        %s320 = sand.u32 %s167, 1
        %s321 = scalar_lea.sflag [#allocation4], %s320
        %s322 = sand.u32 %s167, 1
        %s323 = smul.addr %s322, 8
        %s324 = scalar_lea.vmem [#allocation11], %s323
        %s325 = sadd.s32 %s30, %s31
        %s326 = smul.u32 16, %s325
        %s327 = smul.u32 2, %s30
        %v330 = vld [vmem:[%s282] sm:$0xf]
        %v331 = vld [vmem:[%s282 + $0x4] sm:$0xf]
        %v332 = vld [vmem:[%s282 + $0x8] sm:$0xf]
        %v333 = vld [vmem:[%s282 + $0xc] sm:$0xf]
        %v334 = vld [vmem:[%s282 + $0x10] sm:$0xf]
        %v335 = vld [vmem:[%s282 + $0x14] sm:$0xf]
        %v336 = vld [vmem:[%s282 + $0x18] sm:$0xf]
        %v337 = vld [vmem:[%s282 + $0x1c] sm:$0xf]
        %v338 = vld [vmem:[%s282 + $0x20] sm:$0xf]
        %v339 = vld [vmem:[%s282 + $0x24] sm:$0xf]
        %v340 = vld [vmem:[%s282 + $0x28] sm:$0xf]
        %v341 = vld [vmem:[%s282 + $0x2c] sm:$0xf]
        %v342 = vld [vmem:[%s282 + $0x30] sm:$0xf]
        %v343 = vld [vmem:[%s282 + $0x34] sm:$0xf]
        %v344 = vld [vmem:[%s282 + $0x38] sm:$0xf]
        %v345 = vld [vmem:[%s282 + $0x3c] sm:$0xf]
        %v346 = vld [vmem:[#allocation5] sm:$0xf]
        %v347 = vld [vmem:[#allocation5 + $0x4] sm:$0xf]
        %v364 = vunpack.c.l.b16 %v330
        %v365 = vunpack.c.l.b16 %v331
        %v366 = vunpack.c.l.b16 %v332
        %v367 = vunpack.c.l.b16 %v333
        %v368 = vunpack.c.l.b16 %v334
        %v369 = vunpack.c.l.b16 %v335
        %v370 = vunpack.c.l.b16 %v336
        %v371 = vunpack.c.l.b16 %v337
        %v372 = vunpack.c.l.b16 %v338
        %v373 = vunpack.c.l.b16 %v339
        %v374 = vunpack.c.l.b16 %v340
        %v375 = vunpack.c.l.b16 %v341
        %v376 = vunpack.c.l.b16 %v342
        %v377 = vunpack.c.l.b16 %v343
        %v378 = vunpack.c.l.b16 %v344
        %v379 = vunpack.c.l.b16 %v345
        %v380 = vpack.c.b16 %v365, %v364
        %v381 = vpack.c.b16 %v367, %v366
        %v382 = vpack.c.b16 %v369, %v368
        %v383 = vpack.c.b16 %v371, %v370
        %v384 = vpack.c.b16 %v373, %v372
        %v385 = vpack.c.b16 %v375, %v374
        %v386 = vpack.c.b16 %v377, %v376
        %v387 = vpack.c.b16 %v379, %v378
        %v390 = vunpack.c.l.b16 %v346
        %v391 = vunpack.c.l.b16 %v347
        %v392 = vpack.c.b16 %v391, %v390
        %vm394 = vcmask 130048
        %v396 = vsel %vm394, %v380, 0
        %v399 = vsel %vm394, %v381, 0
        %v402 = vsel %vm394, %v382, 0
        %v405 = vsel %vm394, %v383, 0
        %v408 = vsel %vm394, %v384, 0
        %v411 = vsel %vm394, %v385, 0
        %v414 = vsel %vm394, %v386, 0
        %v417 = vsel %vm394, %v387, 0
        %419 = vmatprep.subr.bf16.mxu0 0
        %420 = vmatpush1.bf16.msra.mxu0 %v392
        %421 = vmatprep.subr.bf16.mxu0 0
        %422 = vmatpush1.bf16.msra.mxu0 0
        %423 = vmatprep.subr.bf16.mxu0 0
        %424 = vmatpush1.bf16.msra.mxu0 0
        %425 = vmatprep.subr.bf16.mxu0 0
        %426 = vmatpush1.bf16.msra.mxu0 0
        %427 = vmatprep.subr.bf16.mxu0 0
        %428 = vmatpush1.bf16.msra.mxu0 0
        %429 = vmatprep.subr.bf16.mxu0 0
        %430 = vmatpush1.bf16.msra.mxu0 0
        %431 = vmatprep.subr.bf16.mxu0 0
        %432 = vmatpush1.bf16.msra.mxu0 0
        %433 = vmatprep.subr.bf16.mxu0 0
        %434 = vmatpush1.bf16.msra.mxu0 0
        %435 = vmatprep.subr.bf16.mxu0 0
        %436 = vmatpush1.bf16.msra.mxu0 0
        %437 = vmatprep.subr.bf16.mxu0 0
        %438 = vmatpush1.bf16.msra.mxu0 0
        %439 = vmatprep.subr.bf16.mxu0 0
        %440 = vmatpush1.bf16.msra.mxu0 0
        %441 = vmatprep.subr.bf16.mxu0 0
        %442 = vmatpush1.bf16.msra.mxu0 0
        %443 = vmatprep.subr.bf16.mxu0 0
        %444 = vmatpush1.bf16.msra.mxu0 0
        %445 = vmatprep.subr.bf16.mxu0 0
        %446 = vmatpush1.bf16.msra.mxu0 0
        %447 = vmatprep.subr.bf16.mxu0 0
        %448 = vmatpush1.bf16.msra.mxu0 0
        %449 = vmatprep.subr.bf16.mxu0 0
        %450 = vmatpush1.bf16.msra.mxu0 0
        %451 = vmatprep.mubr.bf16.mxu0 0
        %452 = vmatmul.mubr.bf16.gmra.mrb[0].mxu0 %v396
        %v453 = vpop.f32.mrb[0].mxu0
        %v454 = vadd.f32 0.0, %v453
        %v455 = vpop.f32.mrb[0].mxu0
        %v456 = vpop.f32.mrb[0].mxu0
        %v457 = vadd.f32 0.0, %v456
        %v458 = vpop.f32.mrb[0].mxu0
        %459 = vmatprep.mubr.bf16.mxu0 0
        %460 = vmatmul.mubr.bf16.gmra.mrb[0].mxu0 %v399
        %v461 = vpop.f32.mrb[0].mxu0
        %v462 = vadd.f32 0.0, %v461
        %v463 = vpop.f32.mrb[0].mxu0
        %v464 = vpop.f32.mrb[0].mxu0
        %v465 = vadd.f32 0.0, %v464
        %v466 = vpop.f32.mrb[0].mxu0
        %467 = vmatprep.mubr.bf16.mxu0 0
        %468 = vmatmul.mubr.bf16.gmra.mrb[0].mxu0 %v402
        %v469 = vpop.f32.mrb[0].mxu0
        %v470 = vadd.f32 0.0, %v469
        %v471 = vpop.f32.mrb[0].mxu0
        %v472 = vpop.f32.mrb[0].mxu0
        %v473 = vadd.f32 0.0, %v472
        %v474 = vpop.f32.mrb[0].mxu0
        %475 = vmatprep.mubr.bf16.mxu0 0
        %476 = vmatmul.mubr.bf16.gmra.mrb[0].mxu0 %v405
        %v477 = vpop.f32.mrb[0].mxu0
        %v478 = vadd.f32 0.0, %v477
        %v479 = vpop.f32.mrb[0].mxu0
        %v480 = vpop.f32.mrb[0].mxu0
        %v481 = vadd.f32 0.0, %v480
        %v482 = vpop.f32.mrb[0].mxu0
        %483 = vmatprep.mubr.bf16.mxu0 0
        %484 = vmatmul.mubr.bf16.gmra.mrb[0].mxu0 %v408
        %v485 = vpop.f32.mrb[0].mxu0
        %v486 = vadd.f32 0.0, %v485
        %v487 = vpop.f32.mrb[0].mxu0
        %v488 = vpop.f32.mrb[0].mxu0
        %v489 = vadd.f32 0.0, %v488
        %v490 = vpop.f32.mrb[0].mxu0
        %491 = vmatprep.mubr.bf16.mxu0 0
        %492 = vmatmul.mubr.bf16.gmra.mrb[0].mxu0 %v411
        %v493 = vpop.f32.mrb[0].mxu0
        %v494 = vadd.f32 0.0, %v493
        %v495 = vpop.f32.mrb[0].mxu0
        %v496 = vpop.f32.mrb[0].mxu0
        %v497 = vadd.f32 0.0, %v496
        %v498 = vpop.f32.mrb[0].mxu0
        %499 = vmatprep.mubr.bf16.mxu0 0
        %500 = vmatmul.mubr.bf16.gmra.mrb[0].mxu0 %v414
        %v501 = vpop.f32.mrb[0].mxu0
        %v502 = vadd.f32 0.0, %v501
        %v503 = vpop.f32.mrb[0].mxu0
        %v504 = vpop.f32.mrb[0].mxu0
        %v505 = vadd.f32 0.0, %v504
        %v506 = vpop.f32.mrb[0].mxu0
        %507 = vmatprep.mubr.bf16.mxu0 0
        %508 = vmatmul.mubr.bf16.gmra.mrb[0].mxu0 %v417
        %v509 = vpop.f32.mrb[0].mxu0
        %v510 = vadd.f32 0.0, %v509
        %v511 = vpop.f32.mrb[0].mxu0
        %v512 = vpop.f32.mrb[0].mxu0
        %v513 = vadd.f32 0.0, %v512
        %v514 = vpop.f32.mrb[0].mxu0
        %515 = vdwg.mxu0
        %v516 = vpack.c.bf16 %v457, %v454
        %v517 = vpack.c.bf16 %v465, %v462
        %v518 = vpack.c.bf16 %v473, %v470
        %v519 = vpack.c.bf16 %v481, %v478
        %v520 = vpack.c.bf16 %v489, %v486
        %v521 = vpack.c.bf16 %v497, %v494
        %v522 = vpack.c.bf16 %v505, %v502
        %v523 = vpack.c.bf16 %v513, %v510
        %v524 = vmax.bf16 %v516, 0
        %v525 = vmax.bf16 %v517, 0
        %v526 = vmax.bf16 %v518, 0
        %v527 = vmax.bf16 %v519, 0
        %v528 = vmax.bf16 %v520, 0
        %v529 = vmax.bf16 %v521, 0
        %v530 = vmax.bf16 %v522, 0
        %v531 = vmax.bf16 %v523, 0
        %v532 = vld [vmem:[#allocation8] sm:$0xf]
        %v533 = vld [vmem:[#allocation8 + $0x4] sm:$0xf]
        %v534 = vld [vmem:[#allocation8 + $0x8] sm:$0xf]
        %v535 = vld [vmem:[#allocation8 + $0xc] sm:$0xf]
        %v536 = vld [vmem:[#allocation8 + $0x10] sm:$0xf]
        %v537 = vld [vmem:[#allocation8 + $0x14] sm:$0xf]
        %v538 = vld [vmem:[#allocation8 + $0x18] sm:$0xf]
        %v539 = vld [vmem:[#allocation8 + $0x1c] sm:$0xf]
        %v540 = vld [vmem:[#allocation8 + $0x20] sm:$0xf]
        %v541 = vld [vmem:[#allocation8 + $0x24] sm:$0xf]
        %v542 = vld [vmem:[#allocation8 + $0x28] sm:$0xf]
        %v543 = vld [vmem:[#allocation8 + $0x2c] sm:$0xf]
        %v544 = vld [vmem:[#allocation8 + $0x30] sm:$0xf]
        %v545 = vld [vmem:[#allocation8 + $0x34] sm:$0xf]
        %v546 = vld [vmem:[#allocation8 + $0x38] sm:$0xf]
        %v547 = vld [vmem:[#allocation8 + $0x3c] sm:$0xf]
        %v564 = vunpack.c.l.b16 %v532
        %v565 = vunpack.c.l.b16 %v533
        %v566 = vunpack.c.l.b16 %v534
        %v567 = vunpack.c.l.b16 %v535
        %v568 = vunpack.c.l.b16 %v536
        %v569 = vunpack.c.l.b16 %v537
        %v570 = vunpack.c.l.b16 %v538
        %v571 = vunpack.c.l.b16 %v539
        %v572 = vunpack.c.l.b16 %v540
        %v573 = vunpack.c.l.b16 %v541
        %v574 = vunpack.c.l.b16 %v542
        %v575 = vunpack.c.l.b16 %v543
        %v576 = vunpack.c.l.b16 %v544
        %v577 = vunpack.c.l.b16 %v545
        %v578 = vunpack.c.l.b16 %v546
        %v579 = vunpack.c.l.b16 %v547
        %v580 = vpack.c.b16 %v565, %v564
        %v581 = vpack.c.b16 %v567, %v566
        %v582 = vpack.c.b16 %v569, %v568
        %v583 = vpack.c.b16 %v571, %v570
        %v584 = vpack.c.b16 %v573, %v572
        %v585 = vpack.c.b16 %v575, %v574
        %v586 = vpack.c.b16 %v577, %v576
        %v587 = vpack.c.b16 %v579, %v578
        %596 = vmatprep.subr.bf16.mxu0 0
        %597 = vmatpush1.bf16.msra.mxu0 %v580
        %598 = vmatprep.subr.bf16.mxu0 0
        %599 = vmatpush1.bf16.msra.mxu0 %v581
        %600 = vmatprep.subr.bf16.mxu0 0
        %601 = vmatpush1.bf16.msra.mxu0 %v582
        %602 = vmatprep.subr.bf16.mxu0 0
        %603 = vmatpush1.bf16.msra.mxu0 %v583
        %604 = vmatprep.subr.bf16.mxu0 0
        %605 = vmatpush1.bf16.msra.mxu0 %v584
        %606 = vmatprep.subr.bf16.mxu0 0
        %607 = vmatpush1.bf16.msra.mxu0 %v585
        %608 = vmatprep.subr.bf16.mxu0 0
        %609 = vmatpush1.bf16.msra.mxu0 %v586
        %610 = vmatprep.subr.bf16.mxu0 0
        %611 = vmatpush1.bf16.msra.mxu0 %v587
        %612 = vmatprep.subr.bf16.mxu0 0
        %613 = vmatpush1.bf16.msra.mxu0 0
        %614 = vmatprep.subr.bf16.mxu0 0
        %615 = vmatpush1.bf16.msra.mxu0 0
        %616 = vmatprep.subr.bf16.mxu0 0
        %617 = vmatpush1.bf16.msra.mxu0 0
        %618 = vmatprep.subr.bf16.mxu0 0
        %619 = vmatpush1.bf16.msra.mxu0 0
        %620 = vmatprep.subr.bf16.mxu0 0
        %621 = vmatpush1.bf16.msra.mxu0 0
        %622 = vmatprep.subr.bf16.mxu0 0
        %623 = vmatpush1.bf16.msra.mxu0 0
        %624 = vmatprep.subr.bf16.mxu0 0
        %625 = vmatpush1.bf16.msra.mxu0 0
        %626 = vmatprep.subr.bf16.mxu0 0
        %627 = vmatpush1.bf16.msra.mxu0 0
        %628 = vmatprep.mubr.bf16.mxu0 0
        %629 = vmatmul.mubr.bf16.gmra.mrb[0].mxu0 %v524
        %v630 = vpop.f32.mrb[0].mxu0
        %v631 = vadd.f32 0.0, %v630
        %v632 = vpop.f32.mrb[0].mxu0
        %v633 = vpop.f32.mrb[0].mxu0
        %v634 = vadd.f32 0.0, %v633
        %v635 = vpop.f32.mrb[0].mxu0
        %636 = vmatprep.mubr.bf16.mxu0 0
        %637 = vmatmul.mubr.bf16.gmra.mrb[0].mxu0 %v525
        %v638 = vpop.f32.mrb[0].mxu0
        %v639 = vadd.f32 0.0, %v638
        %v640 = vpop.f32.mrb[0].mxu0
        %v641 = vpop.f32.mrb[0].mxu0
        %v642 = vadd.f32 0.0, %v641
        %v643 = vpop.f32.mrb[0].mxu0
        %644 = vmatprep.mubr.bf16.mxu0 0
        %645 = vmatmul.mubr.bf16.gmra.mrb[0].mxu0 %v526
        %v646 = vpop.f32.mrb[0].mxu0
        %v647 = vadd.f32 0.0, %v646
        %v648 = vpop.f32.mrb[0].mxu0
        %v649 = vpop.f32.mrb[0].mxu0
        %v650 = vadd.f32 0.0, %v649
        %v651 = vpop.f32.mrb[0].mxu0
        %652 = vmatprep.mubr.bf16.mxu0 0
        %653 = vmatmul.mubr.bf16.gmra.mrb[0].mxu0 %v527
        %v654 = vpop.f32.mrb[0].mxu0
        %v655 = vadd.f32 0.0, %v654
        %v656 = vpop.f32.mrb[0].mxu0
        %v657 = vpop.f32.mrb[0].mxu0
        %v658 = vadd.f32 0.0, %v657
        %v659 = vpop.f32.mrb[0].mxu0
        %660 = vmatprep.mubr.bf16.mxu0 0
        %661 = vmatmul.mubr.bf16.gmra.mrb[0].mxu0 %v528
        %v662 = vpop.f32.mrb[0].mxu0
        %v663 = vadd.f32 0.0, %v662
        %v664 = vpop.f32.mrb[0].mxu0
        %v665 = vpop.f32.mrb[0].mxu0
        %v666 = vadd.f32 0.0, %v665
        %v667 = vpop.f32.mrb[0].mxu0
        %668 = vmatprep.mubr.bf16.mxu0 0
        %669 = vmatmul.mubr.bf16.gmra.mrb[0].mxu0 %v529
        %v670 = vpop.f32.mrb[0].mxu0
        %v671 = vadd.f32 0.0, %v670
        %v672 = vpop.f32.mrb[0].mxu0
        %v673 = vpop.f32.mrb[0].mxu0
        %v674 = vadd.f32 0.0, %v673
        %v675 = vpop.f32.mrb[0].mxu0
        %676 = vmatprep.mubr.bf16.mxu0 0
        %677 = vmatmul.mubr.bf16.gmra.mrb[0].mxu0 %v530
        %v678 = vpop.f32.mrb[0].mxu0
        %v679 = vadd.f32 0.0, %v678
        %v680 = vpop.f32.mrb[0].mxu0
        %v681 = vpop.f32.mrb[0].mxu0
        %v682 = vadd.f32 0.0, %v681
        %v683 = vpop.f32.mrb[0].mxu0
        %684 = vmatprep.mubr.bf16.mxu0 0
        %685 = vmatmul.mubr.bf16.gmra.mrb[0].mxu0 %v531
        %v686 = vpop.f32.mrb[0].mxu0
        %v687 = vadd.f32 0.0, %v686
        %v688 = vpop.f32.mrb[0].mxu0
        %v689 = vpop.f32.mrb[0].mxu0
        %v690 = vadd.f32 0.0, %v689
        %v691 = vpop.f32.mrb[0].mxu0
        %692 = vdwg.mxu0
        %v693 = vpack.c.bf16 %v634, %v631
        %v694 = vpack.c.bf16 %v642, %v639
        %v695 = vpack.c.bf16 %v650, %v647
        %v696 = vpack.c.bf16 %v658, %v655
        %v697 = vpack.c.bf16 %v666, %v663
        %v698 = vpack.c.bf16 %v674, %v671
        %v699 = vpack.c.bf16 %v682, %v679
        %v700 = vpack.c.bf16 %v690, %v687
        %v701 = vmax.bf16 %v693, 0
        %v702 = vmax.bf16 %v694, 0
        %v703 = vmax.bf16 %v695, 0
        %v704 = vmax.bf16 %v696, 0
        %v705 = vmax.bf16 %v697, 0
        %v706 = vmax.bf16 %v698, 0
        %v707 = vmax.bf16 %v699, 0
        %v708 = vmax.bf16 %v700, 0
        %v717 = vunpack.c.l.b16 %v701
        %v718 = vunpack.c.h.b16 %v701
        %v719 = vunpack.c.l.b16 %v702
        %v720 = vunpack.c.h.b16 %v702
        %v721 = vunpack.c.l.b16 %v703
        %v722 = vunpack.c.h.b16 %v703
        %v723 = vunpack.c.l.b16 %v704
        %v724 = vunpack.c.h.b16 %v704
        %v725 = vunpack.c.l.b16 %v705
        %v726 = vunpack.c.h.b16 %v705
        %v727 = vunpack.c.l.b16 %v706
        %v728 = vunpack.c.h.b16 %v706
        %v729 = vunpack.c.l.b16 %v707
        %v730 = vunpack.c.h.b16 %v707
        %v731 = vunpack.c.l.b16 %v708
        %v732 = vunpack.c.h.b16 %v708
        %v733 = vpack.c.b16 %v717, %v717
        %v734 = vpack.c.b16 %v718, %v718
        %v735 = vpack.c.b16 %v719, %v719
        %v736 = vpack.c.b16 %v720, %v720
        %v737 = vpack.c.b16 %v721, %v721
        %v738 = vpack.c.b16 %v722, %v722
        %v739 = vpack.c.b16 %v723, %v723
        %v740 = vpack.c.b16 %v724, %v724
        %v741 = vpack.c.b16 %v725, %v725
        %v742 = vpack.c.b16 %v726, %v726
        %v743 = vpack.c.b16 %v727, %v727
        %v744 = vpack.c.b16 %v728, %v728
        %v745 = vpack.c.b16 %v729, %v729
        %v746 = vpack.c.b16 %v730, %v730
        %v747 = vpack.c.b16 %v731, %v731
        %v748 = vpack.c.b16 %v732, %v732
        %vm749 = vcmask 1043456
        %v752 = vsel %vm749, %v733, 4286644096
        %v754 = vunpack.i.l.bf16 %v752
        %v755 = vunpack.i.h.bf16 %v752
        %v756 = vmax.f32 %v754, %v755
        %v757 = vrot.slane %v756, 4
        %v758 = vmax.f32 %v756, %v757
        %v759 = vrot.slane %v758, 2
        %v760 = vmax.f32 %v758, %v759
        %v761 = vrot.slane %v760, 1
        %v762 = vmax.f32 %v760, %v761
        %v763 = vpack.i.bf16 %v762, %v762
        %v765 = vsel %vm749, %v734, 4286644096
        %v767 = vunpack.i.l.bf16 %v765
        %v768 = vunpack.i.h.bf16 %v765
        %v769 = vmax.f32 %v767, %v768
        %v770 = vrot.slane %v769, 4
        %v771 = vmax.f32 %v769, %v770
        %v772 = vrot.slane %v771, 2
        %v773 = vmax.f32 %v771, %v772
        %v774 = vrot.slane %v773, 1
        %v775 = vmax.f32 %v773, %v774
        %v776 = vpack.i.bf16 %v775, %v775
        %v778 = vsel %vm749, %v735, 4286644096
        %v780 = vunpack.i.l.bf16 %v778
        %v781 = vunpack.i.h.bf16 %v778
        %v782 = vmax.f32 %v780, %v781
        %v783 = vrot.slane %v782, 4
        %v784 = vmax.f32 %v782, %v783
        %v785 = vrot.slane %v784, 2
        %v786 = vmax.f32 %v784, %v785
        %v787 = vrot.slane %v786, 1
        %v788 = vmax.f32 %v786, %v787
        %v789 = vpack.i.bf16 %v788, %v788
        %v791 = vsel %vm749, %v736, 4286644096
        %v793 = vunpack.i.l.bf16 %v791
        %v794 = vunpack.i.h.bf16 %v791
        %v795 = vmax.f32 %v793, %v794
        %v796 = vrot.slane %v795, 4
        %v797 = vmax.f32 %v795, %v796
        %v798 = vrot.slane %v797, 2
        %v799 = vmax.f32 %v797, %v798
        %v800 = vrot.slane %v799, 1
        %v801 = vmax.f32 %v799, %v800
        %v802 = vpack.i.bf16 %v801, %v801
        %v804 = vsel %vm749, %v737, 4286644096
        %v806 = vunpack.i.l.bf16 %v804
        %v807 = vunpack.i.h.bf16 %v804
        %v808 = vmax.f32 %v806, %v807
        %v809 = vrot.slane %v808, 4
        %v810 = vmax.f32 %v808, %v809
        %v811 = vrot.slane %v810, 2
        %v812 = vmax.f32 %v810, %v811
        %v813 = vrot.slane %v812, 1
        %v814 = vmax.f32 %v812, %v813
        %v815 = vpack.i.bf16 %v814, %v814
        %v817 = vsel %vm749, %v738, 4286644096
        %v819 = vunpack.i.l.bf16 %v817
        %v820 = vunpack.i.h.bf16 %v817
        %v821 = vmax.f32 %v819, %v820
        %v822 = vrot.slane %v821, 4
        %v823 = vmax.f32 %v821, %v822
        %v824 = vrot.slane %v823, 2
        %v825 = vmax.f32 %v823, %v824
        %v826 = vrot.slane %v825, 1
        %v827 = vmax.f32 %v825, %v826
        %v828 = vpack.i.bf16 %v827, %v827
        %v830 = vsel %vm749, %v739, 4286644096
        %v832 = vunpack.i.l.bf16 %v830
        %v833 = vunpack.i.h.bf16 %v830
        %v834 = vmax.f32 %v832, %v833
        %v835 = vrot.slane %v834, 4
        %v836 = vmax.f32 %v834, %v835
        %v837 = vrot.slane %v836, 2
        %v838 = vmax.f32 %v836, %v837
        %v839 = vrot.slane %v838, 1
        %v840 = vmax.f32 %v838, %v839
        %v841 = vpack.i.bf16 %v840, %v840
        %v843 = vsel %vm749, %v740, 4286644096
        %v845 = vunpack.i.l.bf16 %v843
        %v846 = vunpack.i.h.bf16 %v843
        %v847 = vmax.f32 %v845, %v846
        %v848 = vrot.slane %v847, 4
        %v849 = vmax.f32 %v847, %v848
        %v850 = vrot.slane %v849, 2
        %v851 = vmax.f32 %v849, %v850
        %v852 = vrot.slane %v851, 1
        %v853 = vmax.f32 %v851, %v852
        %v854 = vpack.i.bf16 %v853, %v853
        %v856 = vsel %vm749, %v741, 4286644096
        %v858 = vunpack.i.l.bf16 %v856
        %v859 = vunpack.i.h.bf16 %v856
        %v860 = vmax.f32 %v858, %v859
        %v861 = vrot.slane %v860, 4
        %v862 = vmax.f32 %v860, %v861
        %v863 = vrot.slane %v862, 2
        %v864 = vmax.f32 %v862, %v863
        %v865 = vrot.slane %v864, 1
        %v866 = vmax.f32 %v864, %v865
        %v867 = vpack.i.bf16 %v866, %v866
        %v869 = vsel %vm749, %v742, 4286644096
        %v871 = vunpack.i.l.bf16 %v869
        %v872 = vunpack.i.h.bf16 %v869
        %v873 = vmax.f32 %v871, %v872
        %v874 = vrot.slane %v873, 4
        %v875 = vmax.f32 %v873, %v874
        %v876 = vrot.slane %v875, 2
        %v877 = vmax.f32 %v875, %v876
        %v878 = vrot.slane %v877, 1
        %v879 = vmax.f32 %v877, %v878
        %v880 = vpack.i.bf16 %v879, %v879
        %v882 = vsel %vm749, %v743, 4286644096
        %v884 = vunpack.i.l.bf16 %v882
        %v885 = vunpack.i.h.bf16 %v882
        %v886 = vmax.f32 %v884, %v885
        %v887 = vrot.slane %v886, 4
        %v888 = vmax.f32 %v886, %v887
        %v889 = vrot.slane %v888, 2
        %v890 = vmax.f32 %v888, %v889
        %v891 = vrot.slane %v890, 1
        %v892 = vmax.f32 %v890, %v891
        %v893 = vpack.i.bf16 %v892, %v892
        %v895 = vsel %vm749, %v744, 4286644096
        %v897 = vunpack.i.l.bf16 %v895
        %v898 = vunpack.i.h.bf16 %v895
        %v899 = vmax.f32 %v897, %v898
        %v900 = vrot.slane %v899, 4
        %v901 = vmax.f32 %v899, %v900
        %v902 = vrot.slane %v901, 2
        %v903 = vmax.f32 %v901, %v902
        %v904 = vrot.slane %v903, 1
        %v905 = vmax.f32 %v903, %v904
        %v906 = vpack.i.bf16 %v905, %v905
        %v908 = vsel %vm749, %v745, 4286644096
        %v910 = vunpack.i.l.bf16 %v908
        %v911 = vunpack.i.h.bf16 %v908
        %v912 = vmax.f32 %v910, %v911
        %v913 = vrot.slane %v912, 4
        %v914 = vmax.f32 %v912, %v913
        %v915 = vrot.slane %v914, 2
        %v916 = vmax.f32 %v914, %v915
        %v917 = vrot.slane %v916, 1
        %v918 = vmax.f32 %v916, %v917
        %v919 = vpack.i.bf16 %v918, %v918
        %v921 = vsel %vm749, %v746, 4286644096
        %v923 = vunpack.i.l.bf16 %v921
        %v924 = vunpack.i.h.bf16 %v921
        %v925 = vmax.f32 %v923, %v924
        %v926 = vrot.slane %v925, 4
        %v927 = vmax.f32 %v925, %v926
        %v928 = vrot.slane %v927, 2
        %v929 = vmax.f32 %v927, %v928
        %v930 = vrot.slane %v929, 1
        %v931 = vmax.f32 %v929, %v930
        %v932 = vpack.i.bf16 %v931, %v931
        %v934 = vsel %vm749, %v747, 4286644096
        %v936 = vunpack.i.l.bf16 %v934
        %v937 = vunpack.i.h.bf16 %v934
        %v938 = vmax.f32 %v936, %v937
        %v939 = vrot.slane %v938, 4
        %v940 = vmax.f32 %v938, %v939
        %v941 = vrot.slane %v940, 2
        %v942 = vmax.f32 %v940, %v941
        %v943 = vrot.slane %v942, 1
        %v944 = vmax.f32 %v942, %v943
        %v945 = vpack.i.bf16 %v944, %v944
        %v947 = vsel %vm749, %v748, 4286644096
        %v949 = vunpack.i.l.bf16 %v947
        %v950 = vunpack.i.h.bf16 %v947
        %v951 = vmax.f32 %v949, %v950
        %v952 = vrot.slane %v951, 4
        %v953 = vmax.f32 %v951, %v952
        %v954 = vrot.slane %v953, 2
        %v955 = vmax.f32 %v953, %v954
        %v956 = vrot.slane %v955, 1
        %v957 = vmax.f32 %v955, %v956
        %v958 = vpack.i.bf16 %v957, %v957
        %p959 = scmp.eq.s32.totalorder %s31, 0
        // Predicated region
        $region61: #{a_call__.1} parent=39 // pred_check
          %p960 = pneg %p959
        $region62: #{a_call__.1} parent=39 // pred_check_branch
          %962 = sbr.rel (%p960) target = $region64
        $region63: #{a_call__.1} parent=39 // pred_region
          %v979 = vunpack.c.l.b16 %v763
          %v980 = vunpack.c.l.b16 %v776
          %v981 = vunpack.c.l.b16 %v789
          %v982 = vunpack.c.l.b16 %v802
          %v983 = vunpack.c.l.b16 %v815
          %v984 = vunpack.c.l.b16 %v828
          %v985 = vunpack.c.l.b16 %v841
          %v986 = vunpack.c.l.b16 %v854
          %v987 = vunpack.c.l.b16 %v867
          %v988 = vunpack.c.l.b16 %v880
          %v989 = vunpack.c.l.b16 %v893
          %v990 = vunpack.c.l.b16 %v906
          %v991 = vunpack.c.l.b16 %v919
          %v992 = vunpack.c.l.b16 %v932
          %v993 = vunpack.c.l.b16 %v945
          %v994 = vunpack.c.l.b16 %v958
          %v995 = vpack.c.b16 %v979, %v979
          %v996 = vpack.c.b16 %v980, %v980
          %v997 = vpack.c.b16 %v981, %v981
          %v998 = vpack.c.b16 %v982, %v982
          %v999 = vpack.c.b16 %v983, %v983
          %v1000 = vpack.c.b16 %v984, %v984
          %v1001 = vpack.c.b16 %v985, %v985
          %v1002 = vpack.c.b16 %v986, %v986
          %v1003 = vpack.c.b16 %v987, %v987
          %v1004 = vpack.c.b16 %v988, %v988
          %v1005 = vpack.c.b16 %v989, %v989
          %v1006 = vpack.c.b16 %v990, %v990
          %v1007 = vpack.c.b16 %v991, %v991
          %v1008 = vpack.c.b16 %v992, %v992
          %v1009 = vpack.c.b16 %v993, %v993
          %v1010 = vpack.c.b16 %v994, %v994
          %v1011 = vunpack.c.l.b16 %v995
          %v1012 = vunpack.c.l.b16 %v996
          %v1013 = vunpack.c.l.b16 %v997
          %v1014 = vunpack.c.l.b16 %v998
          %v1015 = vunpack.c.l.b16 %v999
          %v1016 = vunpack.c.l.b16 %v1000
          %v1017 = vunpack.c.l.b16 %v1001
          %v1018 = vunpack.c.l.b16 %v1002
          %v1019 = vunpack.c.l.b16 %v1003
          %v1020 = vunpack.c.l.b16 %v1004
          %v1021 = vunpack.c.l.b16 %v1005
          %v1022 = vunpack.c.l.b16 %v1006
          %v1023 = vunpack.c.l.b16 %v1007
          %v1024 = vunpack.c.l.b16 %v1008
          %v1025 = vunpack.c.l.b16 %v1009
          %v1026 = vunpack.c.l.b16 %v1010
          %vm1027 = vcmask 1041409
          %v1028 = vsel %vm1027, %v1012, %v1011
          %vm1029 = vcmask 1042434
          %v1030 = vsel %vm1029, %v1013, %v1028
          %vm1031 = vcmask 1043459
          %v1032 = vsel %vm1031, %v1014, %v1030
          %vm1033 = vcmask 1044484
          %v1034 = vsel %vm1033, %v1015, %v1032
          %vm1035 = vcmask 1045509
          %v1036 = vsel %vm1035, %v1016, %v1034
          %vm1037 = vcmask 1046534
          %v1038 = vsel %vm1037, %v1017, %v1036
          %vm1039 = vcmask 1047559
          %v1040 = vsel %vm1039, %v1018, %v1038
          %v1041 = vsel %vm1027, %v1020, %v1019
          %v1042 = vsel %vm1029, %v1021, %v1041
          %v1043 = vsel %vm1031, %v1022, %v1042
          %v1044 = vsel %vm1033, %v1023, %v1043
          %v1045 = vsel %vm1035, %v1024, %v1044
          %v1046 = vsel %vm1037, %v1025, %v1045
          %v1047 = vsel %vm1039, %v1026, %v1046
          %v1048 = vpack.c.b16 %v1040, %v1040
          %v1049 = vpack.c.b16 %v1047, %v1047
          %1052 = vst [vmem:[%s324] sm:$0xf] %v1048
          %1053 = vst [vmem:[%s324 + $0x4] sm:$0xf] %v1049
        $region64: #{a_call__.1} parent=39 // pred_fallthru
          _
        %p1054 = scmp.gt.s32.totalorder %s31, 0
        // Predicated region
        $region65: #{a_call__.1} parent=39 // pred_check
          %p1055 = pneg %p1054
        $region66: #{a_call__.1} parent=39 // pred_check_branch
          %1057 = sbr.rel (%p1055) target = $region68
        $region67: #{a_call__.1} parent=39 // pred_region
          %v1058 = vld [vmem:[%s324] sm:$0xf]
          %v1059 = vld [vmem:[%s324 + $0x4] sm:$0xf]
          %v1076 = vunpack.c.l.b16 %v763
          %v1077 = vunpack.c.l.b16 %v776
          %v1078 = vunpack.c.l.b16 %v789
          %v1079 = vunpack.c.l.b16 %v802
          %v1080 = vunpack.c.l.b16 %v815
          %v1081 = vunpack.c.l.b16 %v828
          %v1082 = vunpack.c.l.b16 %v841
          %v1083 = vunpack.c.l.b16 %v854
          %v1084 = vunpack.c.l.b16 %v867
          %v1085 = vunpack.c.l.b16 %v880
          %v1086 = vunpack.c.l.b16 %v893
          %v1087 = vunpack.c.l.b16 %v906
          %v1088 = vunpack.c.l.b16 %v919
          %v1089 = vunpack.c.l.b16 %v932
          %v1090 = vunpack.c.l.b16 %v945
          %v1091 = vunpack.c.l.b16 %v958
          %v1092 = vpack.c.b16 %v1076, %v1076
          %v1093 = vpack.c.b16 %v1077, %v1077
          %v1094 = vpack.c.b16 %v1078, %v1078
          %v1095 = vpack.c.b16 %v1079, %v1079
          %v1096 = vpack.c.b16 %v1080, %v1080
          %v1097 = vpack.c.b16 %v1081, %v1081
          %v1098 = vpack.c.b16 %v1082, %v1082
          %v1099 = vpack.c.b16 %v1083, %v1083
          %v1100 = vpack.c.b16 %v1084, %v1084
          %v1101 = vpack.c.b16 %v1085, %v1085
          %v1102 = vpack.c.b16 %v1086, %v1086
          %v1103 = vpack.c.b16 %v1087, %v1087
          %v1104 = vpack.c.b16 %v1088, %v1088
          %v1105 = vpack.c.b16 %v1089, %v1089
          %v1106 = vpack.c.b16 %v1090, %v1090
          %v1107 = vpack.c.b16 %v1091, %v1091
          %v1108 = vunpack.c.l.b16 %v1092
          %v1109 = vunpack.c.l.b16 %v1093
          %v1110 = vunpack.c.l.b16 %v1094
          %v1111 = vunpack.c.l.b16 %v1095
          %v1112 = vunpack.c.l.b16 %v1096
          %v1113 = vunpack.c.l.b16 %v1097
          %v1114 = vunpack.c.l.b16 %v1098
          %v1115 = vunpack.c.l.b16 %v1099
          %v1116 = vunpack.c.l.b16 %v1100
          %v1117 = vunpack.c.l.b16 %v1101
          %v1118 = vunpack.c.l.b16 %v1102
          %v1119 = vunpack.c.l.b16 %v1103
          %v1120 = vunpack.c.l.b16 %v1104
          %v1121 = vunpack.c.l.b16 %v1105
          %v1122 = vunpack.c.l.b16 %v1106
          %v1123 = vunpack.c.l.b16 %v1107
          %vm1124 = vcmask 1041409
          %v1125 = vsel %vm1124, %v1109, %v1108
          %vm1126 = vcmask 1042434
          %v1127 = vsel %vm1126, %v1110, %v1125
          %vm1128 = vcmask 1043459
          %v1129 = vsel %vm1128, %v1111, %v1127
          %vm1130 = vcmask 1044484
          %v1131 = vsel %vm1130, %v1112, %v1129
          %vm1132 = vcmask 1045509
          %v1133 = vsel %vm1132, %v1113, %v1131
          %vm1134 = vcmask 1046534
          %v1135 = vsel %vm1134, %v1114, %v1133
          %vm1136 = vcmask 1047559
          %v1137 = vsel %vm1136, %v1115, %v1135
          %v1138 = vsel %vm1124, %v1117, %v1116
          %v1139 = vsel %vm1126, %v1118, %v1138
          %v1140 = vsel %vm1128, %v1119, %v1139
          %v1141 = vsel %vm1130, %v1120, %v1140
          %v1142 = vsel %vm1132, %v1121, %v1141
          %v1143 = vsel %vm1134, %v1122, %v1142
          %v1144 = vsel %vm1136, %v1123, %v1143
          %v1145 = vpack.c.b16 %v1137, %v1137
          %v1146 = vpack.c.b16 %v1144, %v1144
          %v1149 = vmax.bf16 %v1058, %v1145
          %v1150 = vmax.bf16 %v1059, %v1146
          %1151 = vst [vmem:[%s324] sm:$0xf] %v1149
          %1152 = vst [vmem:[%s324 + $0x4] sm:$0xf] %v1150
        $region68: #{a_call__.1} parent=39 // pred_fallthru
          _
        %s1153 = sand.u32 %s167, 1
        %s1154 = scalar_lea.sflag [#allocation4], %s1153
        %s1155 = sand.u32 %s167, 1
        %s1156 = smul.addr %s1155, 8
        %s1157 = scalar_lea.vmem [#allocation11], %s1156
        // Predicated region
        $region69: #{a_call__.1} parent=39 // pred_check
          %p1158 = pneg %p177
        $region70: #{a_call__.1} parent=39 // pred_check_branch
          %1160 = sbr.rel (%p1158) target = $region72
        $region71: #{a_call__.1} parent=39 // pred_region
          %s1161 = smul.u32 2, %s30
          %s1163 = ssub.s32 128, 128
          %1164 = vsyncadd %s1154, %s1163
          %s1165 = smul.addr %s29, 2
          %s1166 = sadd.s32 %s1161, %s1165
          %s1167 = smul.addr %s1166, 64
          %s1168 = scalar_lea.hbm %s5, %s1167
          %s1169 = sshll.u32 %s1157, 4
          %s1170 = int_to_ptr.vmem [resolvable:$true] %s1169
          %1175 = dma.vmem_to_hbm [thread:$0]  %s1170, 128, %s1168, %s1154, 64, 64, 4
        $region72: #{a_call__.1} parent=39 // pred_fallthru
          _
      $region40: #{a_call__.1} parent=5 // pred_fallthru
        _
      %p1176 = scmp.le.s32.totalorder 2, %s19
      // Predicated region
      $region73: #{a_call__.1} parent=5 // pred_check
        %p1177 = pneg %p1176
      $region74: #{a_call__.1} parent=5 // pred_check_branch
        %1179 = sbr.rel (%p1177) target = $region76
      $region75: #{a_call__.1} parent=5 // pred_region
        %s1180 = ssub.s32 %s19, 2
        // Predicated region
        $region77: #{a_call__.1} parent=75 // pred_check
          %p1181 = pneg %p183
        $region78: #{a_call__.1} parent=75 // pred_check_branch
          %1183 = sbr.rel (%p1181) target = $region80
        $region79: #{a_call__.1} parent=75 // pred_region
          %s1184 = sand.u32 %s168, 1
          %s1185 = scalar_lea.sflag [#allocation4], %s1184
          %s1186 = sand.u32 %s168, 1
          %s1187 = smul.addr %s1186, 8
          %s1188 = scalar_lea.vmem [#allocation11], %s1187
          %1189 = dma.done %s1185, 128
        $region80: #{a_call__.1} parent=75 // pred_fallthru
          _
      $region76: #{a_call__.1} parent=5 // pred_fallthru
        _
    $region6: #{a_call__.1} parent=1 // loop_footer
      %s23 = sadd.s32 1, %s19
    $region7: #{a_call__.1} parent=1 // loop_footer_branch
      %18 = sbr.rel target = $region3
    $region8: #{a_call__.1} parent=1 // loop_exit
      _
    %1190 = vsyncpa [#allocation3], 1
    %s1191 = scalar_lea.sflag [#allocation3], 1
    %1192 = vsyncpa %s1191, 1
    %1193 = vsyncpa [#allocation6], 1
    %1194 = vsyncpa [#allocation9], 1
    %1195 = vsyncpa [#allocation4], 1
    %s1196 = scalar_lea.sflag [#allocation4], 1
    %1197 = vsyncpa %s1196, 1

</llo_original>
